<compile_context>
chip_gen: v7x
topology: tpu7x:2x2x1
jax: 0.10.0
libtpu: 0.0.40
codegen_flags: <defaults>
</compile_context>

<pallas_src>
from functools import partial
import inspect

import jax
import jax.numpy as jnp
from jax.experimental import pallas as pl
from jax.experimental.pallas import tpu as pltpu

LANE = 128               # minimal lane-dense output width (multiple of 128)
NEG_BIG = -3e38          # finite "minus infinity" for the time mask
TARGET_M_ROWS = 512      # minimum matmul M rows per grid step


def _charcnn_kernel(x_ref, w_ref, b_ref, m_ref, o_ref, *, b_tile, t_rows):
    """Fused multi-width conv + max-over-time + bias + tanh.

    x_ref: (b_tile * t_rows, K)  pre-built im2col rows (K = w_max*E), bf16/f32
    w_ref: (K, F_pad)            packed conv weights (zero taps for narrow widths)
    b_ref: (1, F_pad)            packed bias, f32
    m_ref: (t_rows, F_pad)       additive time mask (0 valid / -3e38 invalid), f32
    o_ref: (b_tile, F_pad)       pooled features, f32
    """
    f_pad = w_ref.shape[1]
    # One MXU matmul straight off the input block; f32 accumulation.
    acc = jnp.dot(x_ref[...], w_ref[...], preferred_element_type=jnp.float32)
    # (bt*t_rows, F) -> (bt, t_rows, F) is layout-free because t_rows % 8 == 0.
    acc = acc.reshape(b_tile, t_rows, f_pad) + m_ref[...][None, :, :]
    pooled = jnp.max(acc, axis=1)                                  # (b_tile, F_pad)
    # Bias + tanh AFTER the max (exact: tanh monotone, bias constant over time).
    o_ref[...] = jnp.tanh(pooled + b_ref[...]).astype(o_ref.dtype)
    # TODO(synk): activation fixed to tanh; the max-first reorder is exact only
    #             for monotone activations (the PyTorch module takes it as a param).


def _pack_params(torch_weights, torch_biases, filter_width_mapping, w_max, f_pad):
    """Pack per-width PyTorch conv params into one (w_max*E, F_pad) weight + (1, F_pad) bias."""
    w_cols, b_cols = [], []
    for (width, nf), wt, bt in zip(filter_width_mapping, torch_weights, torch_biases):
        wk = jnp.transpose(wt[:, 0], (1, 2, 0))                   # (width, E, F)
        wk = jnp.pad(wk, ((0, w_max - width), (0, 0), (0, 0)))    # zero taps -> w_max
        w_cols.append(wk.reshape(w_max * wk.shape[1], nf))
        b_cols.append(bt)
    w_packed = jnp.concatenate(w_cols, axis=1)                    # (w_max*E, F_total)
    b_packed = jnp.concatenate(b_cols)                            # (F_total,)
    f_total = w_packed.shape[1]
    w_packed = jnp.pad(w_packed, ((0, 0), (0, f_pad - f_total)))
    b_packed = jnp.pad(b_packed, (0, f_pad - f_total)).reshape(1, f_pad)
    return w_packed, b_packed


def _build_time_mask(T, t_rows, filter_width_mapping, f_pad):
    """(t_rows, F_pad) additive mask: 0 where a filter's time position is valid, -3e38 otherwise."""
    f_total = sum(nf for _, nf in filter_width_mapping)
    t = jnp.arange(t_rows)[:, None]
    cols = []
    for width, nf in filter_width_mapping:
        valid = T - width + 1
        col = jnp.where(t < valid, 0.0, NEG_BIG).astype(jnp.float32)
        cols.append(jnp.broadcast_to(col, (t_rows, nf)))
    mask = jnp.concatenate(cols, axis=1)
    return jnp.pad(mask, ((0, 0), (0, f_pad - f_total)))


def _vmem_capacity_bytes():
    try:
        return int(pltpu.get_tpu_info().vmem_capacity_bytes)
    except Exception:
        return 64 * 1024 * 1024        # conservative (v7x per-TC) fallback


def _choose_b_tile(B, t_rows, k_dim, f_pad, in_itemsize, vmem_budget):
    """Batch tile: >= TARGET_M_ROWS matmul rows, multiple of 8 sublanes, VMEM-capped."""
    def live_bytes(bt):
        return (2 * bt * t_rows * k_dim * in_itemsize    # double-buffered im2col block
                + 2 * bt * f_pad * 4                     # double-buffered output block
                + k_dim * f_pad * in_itemsize            # packed weight (grid-invariant)
                + t_rows * f_pad * 4 + f_pad * 4)        # time mask + bias

    b_ceil = -(-B // 8) * 8
    bt = min(b_ceil, -(-max(TARGET_M_ROWS, t_rows) // t_rows))
    bt = -(-bt // 8) * 8
    # Prefer M = bt*t_rows a multiple of 256 (v6e/v7x MXU tile) if it still fits.
    for cand in range(bt, bt + 33, 8):
        if cand <= b_ceil and live_bytes(cand) <= vmem_budget and (cand * t_rows) % 256 == 0:
            bt = cand
            break
    while bt > 8 and live_bytes(bt) > vmem_budget:       # generation-aware VMEM cap
        bt -= 8
    while bt > 8 and -(-B // bt) < 2:                    # keep >= 2 grid steps if batch allows
        bt -= 8
    return max(bt, 8)


def _resident_spec(shape, index_map):
    """BlockSpec for a grid-invariant operand; single-buffer it when supported."""
    try:
        if hasattr(pl, "Buffered") and \
           "pipeline_mode" in inspect.signature(pl.BlockSpec).parameters:
            return pl.BlockSpec(shape, index_map, pipeline_mode=pl.Buffered(1))
    except (TypeError, ValueError):
        pass
    return pl.BlockSpec(shape, index_map)


def charcnn_forward(tokens_nchw, torch_weights, torch_biases, filter_width_mapping,
                    *, compute_dtype=jnp.bfloat16, b_tile=None):
    """Full CharCNN forward.  tokens_nchw: (B, 1, T, E) as in the PyTorch module."""
    tokens = tokens_nchw[:, 0]                        # squeeze the conv channel -> (B, T, E)
    B, T, E = tokens.shape
    w_max = max(w for w, _ in filter_width_mapping)
    assert T >= w_max, f"sequence length T={T} must be >= max filter width {w_max}"
    f_total = sum(nf for _, nf in filter_width_mapping)
    f_pad = -(-f_total // LANE) * LANE                # minimal multiple of 128 lanes
    k_dim = w_max * E
    t_rows = -(-T // 8) * 8                           # time rows padded to 8 sublanes

    w_packed, b_packed = _pack_params(torch_weights, torch_biases,
                                      filter_width_mapping, w_max, f_pad)
    w_packed = w_packed.astype(compute_dtype)
    mask = _build_time_mask(T, t_rows, filter_width_mapping, f_pad)

    # Wrapper-side im2col (layout plumbing): lane-dense K = w_max*E last dim.  The
    # extra w_max x token HBM traffic is negligible vs. the removed in-kernel
    # shifted copies / window scratch.
    tokens_p = jnp.pad(tokens, ((0, 0), (0, (t_rows - T) + w_max - 1), (0, 0)))
    windows = jnp.concatenate(
        [tokens_p[:, s:s + t_rows, :] for s in range(w_max)], axis=-1
    ).astype(compute_dtype)                           # (B, t_rows, k_dim)

    in_itemsize = jnp.dtype(compute_dtype).itemsize
    vmem_cap = _vmem_capacity_bytes()
    vmem_budget = min(int(vmem_cap * 0.375), 40 * 1024 * 1024)   # ~24 MiB v7x, ~40 MiB v5e/v6e
    if b_tile is None:
        b_tile = _choose_b_tile(B, t_rows, k_dim, f_pad, in_itemsize, vmem_budget)
    b_tile = max(8, -(-b_tile // 8) * 8)

    n_steps = -(-B // b_tile)
    if n_steps > 1 and n_steps % 2:                   # even grid -> v7x megacore balance
        n_steps += 1
    b_padded = n_steps * b_tile
    if b_padded != B:
        windows = jnp.pad(windows, ((0, b_padded - B), (0, 0), (0, 0)))
    windows_2d = windows.reshape(b_padded * t_rows, k_dim)       # 2-D matmul LHS slab

    kernel = partial(_charcnn_kernel, b_tile=b_tile, t_rows=t_rows)
    cost = pl.CostEstimate(
        flops=2 * b_padded * t_rows * k_dim * f_pad,
        transcendentals=b_padded * f_pad,
        bytes_accessed=(windows_2d.size * in_itemsize + w_packed.size * in_itemsize
                        + mask.size * 4 + b_packed.size * 4 + b_padded * f_pad * 4),
    )

    out = pl.pallas_call(
        kernel,
        out_shape=jax.ShapeDtypeStruct((b_padded, f_pad), jnp.float32),
        grid=(n_steps,),
        in_specs=[
            pl.BlockSpec((b_tile * t_rows, k_dim), lambda i: (i, 0)),  # im2col rows, tiled over B
            _resident_spec((k_dim, f_pad), lambda i: (0, 0)),          # packed weights (VMEM-resident)
            _resident_spec((1, f_pad), lambda i: (0, 0)),              # packed bias
            _resident_spec((t_rows, f_pad), lambda i: (0, 0)),         # time mask
        ],
        out_specs=pl.BlockSpec((b_tile, f_pad), lambda i: (i, 0)),     # lane-dense output
        compiler_params=pltpu.CompilerParams(
            dimension_semantics=("parallel",),
            vmem_limit_bytes=min(int(vmem_cap * 3 // 4), 96 * 1024 * 1024),
        ),
        cost_estimate=cost,
    )(windows_2d, w_packed, b_packed, mask)

    return out[:B, :f_total]                          # drop batch / lane padding


def _reference_forward(tokens_nchw, torch_weights, torch_biases, filter_width_mapping):
    """Pure-JAX reference mirroring the PyTorch semantics (f32)."""
    tokens = tokens_nchw[:, 0]
    outs = []
    for (width, nf), wt, bt in zip(filter_width_mapping, torch_weights, torch_biases):
        w = jnp.transpose(wt[:, 0], (1, 2, 0))                   # (width, E, F)
        t_out = tokens.shape[1] - width + 1
        windows = jnp.stack(
            [tokens[:, s:s + t_out, :] for s in range(width)], axis=2
        )                                                         # (B, t_out, width, E)
        scores = jnp.einsum("btwe,wef->btf", windows, w) + bt[None, None, :]
        outs.append(jnp.max(jnp.tanh(scores), axis=1))
    return jnp.concatenate(outs, axis=1)


if __name__ == "__main__":
    # Small but representative CharCNN shapes: B words, T=16 chars, E=16 char-emb.
    # B=100 is deliberately not a multiple of the tile to exercise batch padding.
    B, T, E = 100, 16, 16
    filter_width_mapping = [(2, 8), (3, 16), (4, 32)]            # (width, num_filters)
    total_filters = sum(f for _, f in filter_width_mapping)

    key = jax.random.PRNGKey(0)
    keys = jax.random.split(key, 1 + 2 * len(filter_width_mapping))

    # Input in the PyTorch layout: (B, C=1, T, E)
    tokens_nchw = jax.random.normal(keys[0], (B, 1, T, E), dtype=jnp.float32)

    # Deterministic params with nn.Conv2d(1, F, (width, E), bias=True) shapes.
    torch_weights, torch_biases = [], []
    for idx, (width, num_filters) in enumerate(filter_width_mapping):
        kw, kb = keys[1 + 2 * idx], keys[2 + 2 * idx]
        torch_weights.append(
            0.1 * jax.random.normal(kw, (num_filters, 1, width, E), jnp.float32))
        torch_biases.append(
            0.1 * jax.random.normal(kb, (num_filters,), jnp.float32))

    ref = _reference_forward(tokens_nchw, torch_weights, torch_biases,
                             filter_width_mapping)

    # f32 path: exact-semantics check.
    out_f32 = charcnn_forward(tokens_nchw, torch_weights, torch_biases,
                              filter_width_mapping, compute_dtype=jnp.float32)
    out_f32 = jax.block_until_ready(out_f32)
    assert out_f32.shape == (B, total_filters), out_f32.shape
    assert jnp.allclose(out_f32, ref, atol=1e-4, rtol=1e-4), (
        float(jnp.max(jnp.abs(out_f32 - ref))))

    # bf16 operands (perf default on v6e/v7x): f32 MXU accumulation + f32 epilogue.
    out_bf16 = jax.block_until_ready(
        charcnn_forward(tokens_nchw, torch_weights, torch_biases, filter_width_mapping))
    assert out_bf16.shape == (B, total_filters), out_bf16.shape
    assert jnp.allclose(out_bf16, ref, atol=2e-2, rtol=2e-2), (
        float(jnp.max(jnp.abs(out_bf16 - ref))))

    print("KERNEL_OK")
</pallas_src>

<mosaic_0001>
module attributes {stable_mosaic.version = 11 : i64} {
  func.func @_charcnn_kernel(%arg0: i32, %arg1: memref<512x64xf32, #tpu.memory_space<vmem>>, %arg2: memref<64x128xf32, #tpu.memory_space<vmem>>, %arg3: memref<1x128xf32, #tpu.memory_space<vmem>>, %arg4: memref<16x128xf32, #tpu.memory_space<vmem>>, %arg5: memref<32x128xf32, #tpu.memory_space<vmem>>) attributes {dimension_semantics = [#tpu.dimension_semantics<parallel>], iteration_bounds = array<i64: 4>, scalar_prefetch = 0 : i64, scratch_operands = 0 : i64, tpu.core_type = #tpu.core_type<tc>, window_params = [{transform_indices = @transform_0, window_bounds = array<i64: 512, 64>}, {pipeline_mode = #tpu.pipeline_mode<synchronous>, transform_indices = @transform_1, window_bounds = array<i64: 64, 128>}, {pipeline_mode = #tpu.pipeline_mode<synchronous>, transform_indices = @transform_2, window_bounds = array<i64: 1, 128>}, {pipeline_mode = #tpu.pipeline_mode<synchronous>, transform_indices = @transform_3, window_bounds = array<i64: 16, 128>}, {transform_indices = @transform_4, window_bounds = array<i64: 32, 128>}]} {
    %c0 = arith.constant 0 : index
    %c0_0 = arith.constant 0 : index
    %0 = vector.load %arg1[%c0, %c0_0] : memref<512x64xf32, #tpu.memory_space<vmem>>, vector<512x64xf32>
    %c0_1 = arith.constant 0 : index
    %c0_2 = arith.constant 0 : index
    %1 = vector.load %arg2[%c0_1, %c0_2] : memref<64x128xf32, #tpu.memory_space<vmem>>, vector<64x128xf32>
    %cst = arith.constant dense<0.000000e+00> : vector<512x128xf32>
    %2 = tpu.matmul %0, %1, %cst {dimension_numbers = #tpu.dot_dimension_numbers<[1], [0], [0], [1], [0, 0, 1, 1], [], []>} : vector<512x64xf32>, vector<64x128xf32>, vector<512x128xf32> -> vector<512x128xf32>
    %3 = vector.shape_cast %2 : vector<512x128xf32> to vector<32x16x128xf32>
    %c0_3 = arith.constant 0 : index
    %c0_4 = arith.constant 0 : index
    %4 = vector.load %arg4[%c0_3, %c0_4] : memref<16x128xf32, #tpu.memory_space<vmem>>, vector<16x128xf32>
    %5 = vector.shape_cast %4 : vector<16x128xf32> to vector<1x16x128xf32>
    %6 = vector.broadcast %5 : vector<1x16x128xf32> to vector<32x16x128xf32>
    %7 = arith.addf %3, %6 : vector<32x16x128xf32>
    %cst_5 = arith.constant dense<0xFF800000> : vector<32x128xf32>
    %8 = vector.multi_reduction <maximumf>, %7, %cst_5 [1] : vector<32x16x128xf32> to vector<32x128xf32>
    %c0_6 = arith.constant 0 : index
    %c0_7 = arith.constant 0 : index
    %9 = vector.load %arg3[%c0_6, %c0_7] : memref<1x128xf32, #tpu.memory_space<vmem>>, vector<1x128xf32>
    %10 = vector.broadcast %9 : vector<1x128xf32> to vector<32x128xf32>
    %11 = arith.addf %8, %10 : vector<32x128xf32>
    %12 = math.tanh %11 : vector<32x128xf32>
    %c0_8 = arith.constant 0 : index
    %c0_9 = arith.constant 0 : index
    %13 = vector.load %arg5[%c0_8, %c0_9] : memref<32x128xf32, #tpu.memory_space<vmem>>, vector<32x128xf32>
    tpu.vector_store %arg5[%c0_8, %c0_9], %12 {strides = array<i32>} : memref<32x128xf32, #tpu.memory_space<vmem>>, vector<32x128xf32>,
    return
  }
  func.func @transform_0(%arg0: i32) -> (i32, i32) {
    %c0_i32 = arith.constant 0 : i32
    %c0_i32_0 = arith.constant 0 : i32
    return %arg0, %c0_i32 : i32, i32
  }
  func.func @transform_1(%arg0: i32) -> (i32, i32) {
    %c0_i32 = arith.constant 0 : i32
    %c0_i32_0 = arith.constant 0 : i32
    %c0_i32_1 = arith.constant 0 : i32
    return %c0_i32, %c0_i32_0 : i32, i32
  }
  func.func @transform_2(%arg0: i32) -> (i32, i32) {
    %c0_i32 = arith.constant 0 : i32
    %c0_i32_0 = arith.constant 0 : i32
    %c0_i32_1 = arith.constant 0 : i32
    return %c0_i32, %c0_i32_0 : i32, i32
  }
  func.func @transform_3(%arg0: i32) -> (i32, i32) {
    %c0_i32 = arith.constant 0 : i32
    %c0_i32_0 = arith.constant 0 : i32
    %c0_i32_1 = arith.constant 0 : i32
    return %c0_i32, %c0_i32_0 : i32, i32
  }
  func.func @transform_4(%arg0: i32) -> (i32, i32) {
    %c0_i32 = arith.constant 0 : i32
    %c0_i32_0 = arith.constant 0 : i32
    return %arg0, %c0_i32 : i32, i32
  }
}

</mosaic_0001>

<llo_original>
// kernel: tpu_custom_call.1
$region0: #{tpu_custom_call.1}
  #allocation0 [shape = 'u32[]', space=smem, size = 0x4, offset = 0x4, fixed_abs, tag = 'smem constant byte address 0x4 - core index']
  #allocation1 [shape = 'u32[144,128]{1,0:T(1,128)}', space=vmem, size = 0x12000, scoped, tag = 'internal scratch']
  %s0 = inlined_call_operand.vmem [shape: f32[2048,64], index: 0, kind: input, shape index: {}]
  %s1 = inlined_call_operand.vmem [shape: f32[64,128], index: 1, kind: input, shape index: {}]
  %s2 = inlined_call_operand.vmem [shape: f32[1,128], index: 2, kind: input, shape index: {}]
  %s3 = inlined_call_operand.vmem [shape: f32[16,128], index: 3, kind: input, shape index: {}]
  %s4 = inlined_call_operand.hbm [shape: f32[128,128], index: 4, kind: output, shape index: {}]
  %s5 = sld [smem:[#allocation0]]
  $region49: #{tpu_custom_call.1} parent=0
    _
  %s7 = ssub.s32 1, %s5
  %s8 = scalar_select 0, %s7, %s5
  $region1: #{tpu_custom_call.1} parent=0
    #allocation2 [shape = 'u8[32768]{0}', space=vmem, size = 0x8000, scoped, tag = 'output window, operand 0']
    #allocation3 [shape = 's32[2]{0}', space=sflag, size = 0x8, scoped, tag = 'scoped memory for tpu_custom_call.1']
    %9 = vsyncpa [#allocation3], 0
    %s10 = scalar_lea.sflag [#allocation3], 1
    %11 = vsyncpa %s10, 0
    loop: start=0, step=1, limit=6
    $region2: #{tpu_custom_call.1} parent=1 // loop_pre_header
      _
    $region3: #{tpu_custom_call.1} parent=1 // loop_header
      %s13 = sphi 0, %s17
      %p14 = scmp.ge.s32.totalorder %s13, 6
      %s23 = sphi 0, %s25
      %s26 = sphi 0, %s23
      %s27 = sphi 0, %s26
      %s43 = sphi 0, %s27
      %s47 = sphi 0, %s47
      %s49 = sphi 0, %s47
      %s50 = sphi 0, %s49
      %s64 = sphi 0, %s50
      %s68 = sphi 0, %s68
      %s70 = sphi 0, %s68
      %s71 = sphi 0, %s70
      %s85 = sphi 0, %s71
      %s89 = sphi 0, %s89
      %s91 = sphi 0, %s89
      %s92 = sphi 0, %s91
      %s106 = sphi 0, %s92
      %s112 = sphi 0, %s114
      %s115 = sphi 0, %s112
      %s116 = sphi 0, %s115
      %s132 = sphi 0, %s116
    $region4: #{tpu_custom_call.1} parent=1 // loop_header_branch
      %16 = sbr.rel (%p14) target = $region8
    $region5: #{tpu_custom_call.1} parent=1 // loop_body
      %s18 = ssub.s32 %s13, 1
      %s19 = ssub.s32 %s13, 2
      %s20 = sadd.s32 %s13, 1
      %s21 = ssub.s32 %s13, %s20
      %p22 = scmp.eq.s32.totalorder %s21, 0
      %s24 = sadd.s32 %s23, 1
      %s25 = scalar_select %p22, %s23, %s24
      %p28 = pneg %p22
      %p29 = scmp.eq.s32.totalorder %s13, 3
      %p30 = por %p28, %p29
      %p31 = scmp.ne.s32.totalorder %s23, %s26
      %p32 = scmp.eq.s32.totalorder %s13, 0
      %p33 = por %p31, %p32
      %p34 = scmp.ne.s32.totalorder %s23, %s26
      %p35 = scmp.eq.s32.totalorder %s18, 3
      %p36 = por %p34, %p35
      %p37 = scmp.ne.s32.totalorder %s26, %s27
      %p38 = scmp.eq.s32.totalorder %s18, 0
      %p39 = por %p37, %p38
      %p40 = scmp.ne.s32.totalorder %s26, %s27
      %p41 = scmp.eq.s32.totalorder %s19, 3
      %p42 = por %p40, %p41
      %p44 = scmp.ne.s32.totalorder %s27, %s43
      %p45 = scmp.eq.s32.totalorder %s19, 0
      %p46 = por %p44, %p45
      %s48 = sadd.s32 %s47, 1
      %p51 = scmp.eq.s32.totalorder %s13, 3
      %p52 = scmp.ne.s32.totalorder %s47, %s49
      %p53 = scmp.eq.s32.totalorder %s13, 0
      %p54 = por %p52, %p53
      %p55 = scmp.ne.s32.totalorder %s47, %s49
      %p56 = scmp.eq.s32.totalorder %s18, 3
      %p57 = por %p55, %p56
      %p58 = scmp.ne.s32.totalorder %s49, %s50
      %p59 = scmp.eq.s32.totalorder %s18, 0
      %p60 = por %p58, %p59
      %p61 = scmp.ne.s32.totalorder %s49, %s50
      %p62 = scmp.eq.s32.totalorder %s19, 3
      %p63 = por %p61, %p62
      %p65 = scmp.ne.s32.totalorder %s50, %s64
      %p66 = scmp.eq.s32.totalorder %s19, 0
      %p67 = por %p65, %p66
      %s69 = sadd.s32 %s68, 1
      %p72 = scmp.eq.s32.totalorder %s13, 3
      %p73 = scmp.ne.s32.totalorder %s68, %s70
      %p74 = scmp.eq.s32.totalorder %s13, 0
      %p75 = por %p73, %p74
      %p76 = scmp.ne.s32.totalorder %s68, %s70
      %p77 = scmp.eq.s32.totalorder %s18, 3
      %p78 = por %p76, %p77
      %p79 = scmp.ne.s32.totalorder %s70, %s71
      %p80 = scmp.eq.s32.totalorder %s18, 0
      %p81 = por %p79, %p80
      %p82 = scmp.ne.s32.totalorder %s70, %s71
      %p83 = scmp.eq.s32.totalorder %s19, 3
      %p84 = por %p82, %p83
      %p86 = scmp.ne.s32.totalorder %s71, %s85
      %p87 = scmp.eq.s32.totalorder %s19, 0
      %p88 = por %p86, %p87
      %s90 = sadd.s32 %s89, 1
      %p93 = scmp.eq.s32.totalorder %s13, 3
      %p94 = scmp.ne.s32.totalorder %s89, %s91
      %p95 = scmp.eq.s32.totalorder %s13, 0
      %p96 = por %p94, %p95
      %p97 = scmp.ne.s32.totalorder %s89, %s91
      %p98 = scmp.eq.s32.totalorder %s18, 3
      %p99 = por %p97, %p98
      %p100 = scmp.ne.s32.totalorder %s91, %s92
      %p101 = scmp.eq.s32.totalorder %s18, 0
      %p102 = por %p100, %p101
      %p103 = scmp.ne.s32.totalorder %s91, %s92
      %p104 = scmp.eq.s32.totalorder %s19, 3
      %p105 = por %p103, %p104
      %p107 = scmp.ne.s32.totalorder %s92, %s106
      %p108 = scmp.eq.s32.totalorder %s19, 0
      %p109 = por %p107, %p108
      %s110 = ssub.s32 %s13, %s20
      %p111 = scmp.eq.s32.totalorder %s110, 0
      %s113 = sadd.s32 %s112, 1
      %s114 = scalar_select %p111, %s112, %s113
      %p117 = pneg %p111
      %p118 = scmp.eq.s32.totalorder %s13, 3
      %p119 = por %p117, %p118
      %p120 = scmp.ne.s32.totalorder %s112, %s115
      %p121 = scmp.eq.s32.totalorder %s13, 0
      %p122 = por %p120, %p121
      %p123 = scmp.ne.s32.totalorder %s112, %s115
      %p124 = scmp.eq.s32.totalorder %s18, 3
      %p125 = por %p123, %p124
      %p126 = scmp.ne.s32.totalorder %s115, %s116
      %p127 = scmp.eq.s32.totalorder %s18, 0
      %p128 = por %p126, %p127
      %p129 = scmp.ne.s32.totalorder %s115, %s116
      %p130 = scmp.eq.s32.totalorder %s19, 3
      %p131 = por %p129, %p130
      %p133 = scmp.ne.s32.totalorder %s116, %s132
      %p134 = scmp.eq.s32.totalorder %s19, 0
      %p135 = por %p133, %p134
      %p136 = scmp.le.s32.totalorder 1, %s13
      %p137 = scmp.lt.s32.totalorder %s13, 5
      %p138 = pnand %p136, %p137
      %p139 = pneg %p138
      // Predicated region
      $region9: #{tpu_custom_call.1} parent=5 // pred_check
        _
      $region10: #{tpu_custom_call.1} parent=5 // pred_check_branch
        %141 = sbr.rel (%p138) target = $region12
      $region11: #{tpu_custom_call.1} parent=5 // pred_region
        %s142 = ssub.s32 %s13, 1
        // Predicated region
        $region13: #{tpu_custom_call.1} parent=11 // pred_check
          %p143 = pneg %p60
        $region14: #{tpu_custom_call.1} parent=11 // pred_check_branch
          %145 = sbr.rel (%p143) target = $region16
        $region15: #{tpu_custom_call.1} parent=11 // pred_region
          _
        $region16: #{tpu_custom_call.1} parent=11 // pred_fallthru
          _
        // Predicated region
        $region17: #{tpu_custom_call.1} parent=11 // pred_check
          %p146 = pneg %p81
        $region18: #{tpu_custom_call.1} parent=11 // pred_check_branch
          %148 = sbr.rel (%p146) target = $region20
        $region19: #{tpu_custom_call.1} parent=11 // pred_region
          _
        $region20: #{tpu_custom_call.1} parent=11 // pred_fallthru
          _
        // Predicated region
        $region21: #{tpu_custom_call.1} parent=11 // pred_check
          %p149 = pneg %p102
        $region22: #{tpu_custom_call.1} parent=11 // pred_check_branch
          %151 = sbr.rel (%p149) target = $region24
        $region23: #{tpu_custom_call.1} parent=11 // pred_region
          _
        $region24: #{tpu_custom_call.1} parent=11 // pred_fallthru
          _
      $region12: #{tpu_custom_call.1} parent=5 // pred_fallthru
        _
      %p152 = scmp.lt.s32.totalorder %s13, 4
      // Predicated region
      $region25: #{tpu_custom_call.1} parent=5 // pred_check
        %p153 = pneg %p152
      $region26: #{tpu_custom_call.1} parent=5 // pred_check_branch
        %155 = sbr.rel (%p153) target = $region28
      $region27: #{tpu_custom_call.1} parent=5 // pred_region
        // Predicated region
        $region29: #{tpu_custom_call.1} parent=27 // pred_check
          %p156 = pneg %p33
        $region30: #{tpu_custom_call.1} parent=27 // pred_check_branch
          %158 = sbr.rel (%p156) target = $region32
        $region31: #{tpu_custom_call.1} parent=27 // pred_region
          %s159 = smul.u32 64, %s13
          %p160 = scmp.lt.s32.totalorder %s159, 255
          %s161 = scalar_select %p160, %s159, 255
          %s162 = smul.addr %s161, 8
          %s163 = scalar_lea.vmem %s0, %s162
          %s164 = smul.u32 64, %s13
        $region32: #{tpu_custom_call.1} parent=27 // pred_fallthru
          _
      $region28: #{tpu_custom_call.1} parent=5 // pred_fallthru
        _
      %p165 = scmp.le.s32.totalorder 1, %s13
      %p166 = scmp.lt.s32.totalorder %s13, 5
      %p167 = pnand %p165, %p166
      %p168 = pneg %p167
      // Predicated region
      $region33: #{tpu_custom_call.1} parent=5 // pred_check
        _
      $region34: #{tpu_custom_call.1} parent=5 // pred_check_branch
        %170 = sbr.rel (%p167) target = $region36
      $region35: #{tpu_custom_call.1} parent=5 // pred_region
        %s171 = ssub.s32 %s13, 1
        %s172 = smul.u32 64, %s18
        %p173 = scmp.lt.s32.totalorder %s172, 255
        %s174 = scalar_select %p173, %s172, 255
        %s175 = smul.addr %s174, 8
        %s176 = scalar_lea.vmem %s0, %s175
        %p177 = pneg %p39
        %p178 = pneg %p36
        %p179 = pneg %p60
        %p180 = pneg %p57
        %p181 = pneg %p81
        %p182 = pneg %p78
        %p183 = pneg %p102
        %p184 = pneg %p99
        %p185 = pneg %p128
        %p186 = pneg %p125
        %s187 = sand.u32 %s115, 1
        %s188 = scalar_lea.sflag [#allocation3], %s187
        %s189 = sand.u32 %s115, 1
        %s190 = smul.addr %s189, 32
        %s191 = scalar_lea.vmem [#allocation2], %s190
        %s192 = smul.u32 64, %s18
        %p193 = scmp.lt.s32.totalorder %s192, 255
        %s194 = scalar_select %p193, %s192, 255
        %s195 = smul.addr %s194, 8
        %s196 = scalar_lea.vmem %s0, %s195
        %s197 = smul.u32 64, %s18
        %s198 = smul.u32 4, %s18
        %v199 = vld [vmem:[%s196] sm:$0xff]
        %v200 = vld [vmem:[%s196 + $0x8] sm:$0xff]
        %v201 = vld [vmem:[%s196 + $0x10] sm:$0xff]
        %v202 = vld [vmem:[%s196 + $0x18] sm:$0xff]
        %v203 = vld [vmem:[%s196 + $0x20] sm:$0xff]
        %v204 = vld [vmem:[%s196 + $0x28] sm:$0xff]
        %v205 = vld [vmem:[%s196 + $0x30] sm:$0xff]
        %v206 = vld [vmem:[%s196 + $0x38] sm:$0xff]
        %v207 = vld [vmem:[%s196 + $0x40] sm:$0xff]
        %v208 = vld [vmem:[%s196 + $0x48] sm:$0xff]
        %v209 = vld [vmem:[%s196 + $0x50] sm:$0xff]
        %v210 = vld [vmem:[%s196 + $0x58] sm:$0xff]
        %v211 = vld [vmem:[%s196 + $0x60] sm:$0xff]
        %v212 = vld [vmem:[%s196 + $0x68] sm:$0xff]
        %v213 = vld [vmem:[%s196 + $0x70] sm:$0xff]
        %v214 = vld [vmem:[%s196 + $0x78] sm:$0xff]
        %v215 = vld [vmem:[%s196 + $0x80] sm:$0xff]
        %v216 = vld [vmem:[%s196 + $0x88] sm:$0xff]
        %v217 = vld [vmem:[%s196 + $0x90] sm:$0xff]
        %v218 = vld [vmem:[%s196 + $0x98] sm:$0xff]
        %v219 = vld [vmem:[%s196 + $0xa0] sm:$0xff]
        %v220 = vld [vmem:[%s196 + $0xa8] sm:$0xff]
        %v221 = vld [vmem:[%s196 + $0xb0] sm:$0xff]
        %v222 = vld [vmem:[%s196 + $0xb8] sm:$0xff]
        %v223 = vld [vmem:[%s196 + $0xc0] sm:$0xff]
        %v224 = vld [vmem:[%s196 + $0xc8] sm:$0xff]
        %v225 = vld [vmem:[%s196 + $0xd0] sm:$0xff]
        %v226 = vld [vmem:[%s196 + $0xd8] sm:$0xff]
        %v227 = vld [vmem:[%s196 + $0xe0] sm:$0xff]
        %v228 = vld [vmem:[%s196 + $0xe8] sm:$0xff]
        %v229 = vld [vmem:[%s196 + $0xf0] sm:$0xff]
        %v230 = vld [vmem:[%s196 + $0xf8] sm:$0xff]
        %v231 = vld [vmem:[%s196 + $0x100] sm:$0xff]
        %v232 = vld [vmem:[%s196 + $0x108] sm:$0xff]
        %v233 = vld [vmem:[%s196 + $0x110] sm:$0xff]
        %v234 = vld [vmem:[%s196 + $0x118] sm:$0xff]
        %v235 = vld [vmem:[%s196 + $0x120] sm:$0xff]
        %v236 = vld [vmem:[%s196 + $0x128] sm:$0xff]
        %v237 = vld [vmem:[%s196 + $0x130] sm:$0xff]
        %v238 = vld [vmem:[%s196 + $0x138] sm:$0xff]
        %v239 = vld [vmem:[%s196 + $0x140] sm:$0xff]
        %v240 = vld [vmem:[%s196 + $0x148] sm:$0xff]
        %v241 = vld [vmem:[%s196 + $0x150] sm:$0xff]
        %v242 = vld [vmem:[%s196 + $0x158] sm:$0xff]
        %v243 = vld [vmem:[%s196 + $0x160] sm:$0xff]
        %v244 = vld [vmem:[%s196 + $0x168] sm:$0xff]
        %v245 = vld [vmem:[%s196 + $0x170] sm:$0xff]
        %v246 = vld [vmem:[%s196 + $0x178] sm:$0xff]
        %v247 = vld [vmem:[%s196 + $0x180] sm:$0xff]
        %v248 = vld [vmem:[%s196 + $0x188] sm:$0xff]
        %v249 = vld [vmem:[%s196 + $0x190] sm:$0xff]
        %v250 = vld [vmem:[%s196 + $0x198] sm:$0xff]
        %v251 = vld [vmem:[%s196 + $0x1a0] sm:$0xff]
        %v252 = vld [vmem:[%s196 + $0x1a8] sm:$0xff]
        %v253 = vld [vmem:[%s196 + $0x1b0] sm:$0xff]
        %v254 = vld [vmem:[%s196 + $0x1b8] sm:$0xff]
        %v255 = vld [vmem:[%s196 + $0x1c0] sm:$0xff]
        %v256 = vld [vmem:[%s196 + $0x1c8] sm:$0xff]
        %v257 = vld [vmem:[%s196 + $0x1d0] sm:$0xff]
        %v258 = vld [vmem:[%s196 + $0x1d8] sm:$0xff]
        %v259 = vld [vmem:[%s196 + $0x1e0] sm:$0xff]
        %v260 = vld [vmem:[%s196 + $0x1e8] sm:$0xff]
        %v261 = vld [vmem:[%s196 + $0x1f0] sm:$0xff]
        %v262 = vld [vmem:[%s196 + $0x1f8] sm:$0xff]
        %v263 = vld [vmem:[%s1] sm:$0xff]
        %v264 = vld [vmem:[%s1 + $0x8] sm:$0xff]
        %v265 = vld [vmem:[%s1 + $0x10] sm:$0xff]
        %v266 = vld [vmem:[%s1 + $0x18] sm:$0xff]
        %v267 = vld [vmem:[%s1 + $0x20] sm:$0xff]
        %v268 = vld [vmem:[%s1 + $0x28] sm:$0xff]
        %v269 = vld [vmem:[%s1 + $0x30] sm:$0xff]
        %v270 = vld [vmem:[%s1 + $0x38] sm:$0xff]
        %vm271 = vcmask 523264
        %v273 = vsel %vm271, %v199, 0
        %v276 = vsel %vm271, %v200, 0
        %v279 = vsel %vm271, %v201, 0
        %v282 = vsel %vm271, %v202, 0
        %v285 = vsel %vm271, %v203, 0
        %v288 = vsel %vm271, %v204, 0
        %v291 = vsel %vm271, %v205, 0
        %v294 = vsel %vm271, %v206, 0
        %v297 = vsel %vm271, %v207, 0
        %v300 = vsel %vm271, %v208, 0
        %v303 = vsel %vm271, %v209, 0
        %v306 = vsel %vm271, %v210, 0
        %v309 = vsel %vm271, %v211, 0
        %v312 = vsel %vm271, %v212, 0
        %v315 = vsel %vm271, %v213, 0
        %v318 = vsel %vm271, %v214, 0
        %v321 = vsel %vm271, %v215, 0
        %v324 = vsel %vm271, %v216, 0
        %v327 = vsel %vm271, %v217, 0
        %v330 = vsel %vm271, %v218, 0
        %v333 = vsel %vm271, %v219, 0
        %v336 = vsel %vm271, %v220, 0
        %v339 = vsel %vm271, %v221, 0
        %v342 = vsel %vm271, %v222, 0
        %v345 = vsel %vm271, %v223, 0
        %v348 = vsel %vm271, %v224, 0
        %v351 = vsel %vm271, %v225, 0
        %v354 = vsel %vm271, %v226, 0
        %v357 = vsel %vm271, %v227, 0
        %v360 = vsel %vm271, %v228, 0
        %v363 = vsel %vm271, %v229, 0
        %v366 = vsel %vm271, %v230, 0
        %v369 = vsel %vm271, %v231, 0
        %v372 = vsel %vm271, %v232, 0
        %v375 = vsel %vm271, %v233, 0
        %v378 = vsel %vm271, %v234, 0
        %v381 = vsel %vm271, %v235, 0
        %v384 = vsel %vm271, %v236, 0
        %v387 = vsel %vm271, %v237, 0
        %v390 = vsel %vm271, %v238, 0
        %v393 = vsel %vm271, %v239, 0
        %v396 = vsel %vm271, %v240, 0
        %v399 = vsel %vm271, %v241, 0
        %v402 = vsel %vm271, %v242, 0
        %v405 = vsel %vm271, %v243, 0
        %v408 = vsel %vm271, %v244, 0
        %v411 = vsel %vm271, %v245, 0
        %v414 = vsel %vm271, %v246, 0
        %v417 = vsel %vm271, %v247, 0
        %v420 = vsel %vm271, %v248, 0
        %v423 = vsel %vm271, %v249, 0
        %v426 = vsel %vm271, %v250, 0
        %v429 = vsel %vm271, %v251, 0
        %v432 = vsel %vm271, %v252, 0
        %v435 = vsel %vm271, %v253, 0
        %v438 = vsel %vm271, %v254, 0
        %v441 = vsel %vm271, %v255, 0
        %v444 = vsel %vm271, %v256, 0
        %v447 = vsel %vm271, %v257, 0
        %v450 = vsel %vm271, %v258, 0
        %v453 = vsel %vm271, %v259, 0
        %v456 = vsel %vm271, %v260, 0
        %v459 = vsel %vm271, %v261, 0
        %v462 = vsel %vm271, %v262, 0
        %464 = vmatprep.subr.mxu0 0.0
        %465 = vmatpush1.msra.mxu0 %v263
        %466 = vmatprep.subr.mxu0 0.0
        %467 = vmatpush1.msra.mxu0 %v264
        %468 = vmatprep.subr.mxu0 0.0
        %469 = vmatpush1.msra.mxu0 %v265
        %470 = vmatprep.subr.mxu0 0.0
        %471 = vmatpush1.msra.mxu0 %v266
        %472 = vmatprep.subr.mxu0 0.0
        %473 = vmatpush1.msra.mxu0 %v267
        %474 = vmatprep.subr.mxu0 0.0
        %475 = vmatpush1.msra.mxu0 %v268
        %476 = vmatprep.subr.mxu0 0.0
        %477 = vmatpush1.msra.mxu0 %v269
        %478 = vmatprep.subr.mxu0 0.0
        %479 = vmatpush1.msra.mxu0 %v270
        %480 = vmatprep.subr.mxu0 0.0
        %481 = vmatpush1.msra.mxu0 0.0
        %482 = vmatprep.subr.mxu0 0.0
        %483 = vmatpush1.msra.mxu0 0.0
        %484 = vmatprep.subr.mxu0 0.0
        %485 = vmatpush1.msra.mxu0 0.0
        %486 = vmatprep.subr.mxu0 0.0
        %487 = vmatpush1.msra.mxu0 0.0
        %488 = vmatprep.subr.mxu0 0.0
        %489 = vmatpush1.msra.mxu0 0.0
        %490 = vmatprep.subr.mxu0 0.0
        %491 = vmatpush1.msra.mxu0 0.0
        %492 = vmatprep.subr.mxu0 0.0
        %493 = vmatpush1.msra.mxu0 0.0
        %494 = vmatprep.subr.mxu0 0.0
        %495 = vmatpush1.msra.mxu0 0.0
        %496 = vmatprep.subr.mxu0 0.0
        %497 = vmatpush1.msra.mxu0 0.0
        %498 = vmatprep.subr.mxu0 0.0
        %499 = vmatpush1.msra.mxu0 0.0
        %500 = vmatprep.subr.mxu0 0.0
        %501 = vmatpush1.msra.mxu0 0.0
        %502 = vmatprep.subr.mxu0 0.0
        %503 = vmatpush1.msra.mxu0 0.0
        %504 = vmatprep.subr.mxu0 0.0
        %505 = vmatpush1.msra.mxu0 0.0
        %506 = vmatprep.subr.mxu0 0.0
        %507 = vmatpush1.msra.mxu0 0.0
        %508 = vmatprep.subr.mxu0 0.0
        %509 = vmatpush1.msra.mxu0 0.0
        %510 = vmatprep.subr.mxu0 0.0
        %511 = vmatpush1.msra.mxu0 0.0
        %512 = vmatprep.subr.mxu0 0.0
        %513 = vmatpush1.msra.mxu0 0.0
        %514 = vmatprep.subr.mxu0 0.0
        %515 = vmatpush1.msra.mxu0 0.0
        %516 = vmatprep.subr.mxu0 0.0
        %517 = vmatpush1.msra.mxu0 0.0
        %518 = vmatprep.subr.mxu0 0.0
        %519 = vmatpush1.msra.mxu0 0.0
        %520 = vmatprep.subr.mxu0 0.0
        %521 = vmatpush1.msra.mxu0 0.0
        %522 = vmatprep.subr.mxu0 0.0
        %523 = vmatpush1.msra.mxu0 0.0
        %524 = vmatprep.subr.mxu0 0.0
        %525 = vmatpush1.msra.mxu0 0.0
        %526 = vmatprep.subr.mxu0 0.0
        %527 = vmatpush1.msra.mxu0 0.0
        %528 = vmatprep.mubr.f32.mxu0 0.0
        %529 = vmatmul.mubr.f32.gmra.mrb[0].mxu0 %v273
        %v530 = vpop.f32.mrb[0].mxu0
        %v531 = vadd.f32 0.0, %v530
        %v532 = vpop.f32.mrb[0].mxu0
        %533 = vmatprep.mubr.f32.mxu0 0.0
        %534 = vmatmul.mubr.f32.gmra.mrb[0].mxu0 %v276
        %v535 = vpop.f32.mrb[0].mxu0
        %v536 = vadd.f32 0.0, %v535
        %v537 = vpop.f32.mrb[0].mxu0
        %538 = vmatprep.mubr.f32.mxu0 0.0
        %539 = vmatmul.mubr.f32.gmra.mrb[0].mxu0 %v279
        %v540 = vpop.f32.mrb[0].mxu0
        %v541 = vadd.f32 0.0, %v540
        %v542 = vpop.f32.mrb[0].mxu0
        %543 = vmatprep.mubr.f32.mxu0 0.0
        %544 = vmatmul.mubr.f32.gmra.mrb[0].mxu0 %v282
        %v545 = vpop.f32.mrb[0].mxu0
        %v546 = vadd.f32 0.0, %v545
        %v547 = vpop.f32.mrb[0].mxu0
        %548 = vmatprep.mubr.f32.mxu0 0.0
        %549 = vmatmul.mubr.f32.gmra.mrb[0].mxu0 %v285
        %v550 = vpop.f32.mrb[0].mxu0
        %v551 = vadd.f32 0.0, %v550
        %v552 = vpop.f32.mrb[0].mxu0
        %553 = vmatprep.mubr.f32.mxu0 0.0
        %554 = vmatmul.mubr.f32.gmra.mrb[0].mxu0 %v288
        %v555 = vpop.f32.mrb[0].mxu0
        %v556 = vadd.f32 0.0, %v555
        %v557 = vpop.f32.mrb[0].mxu0
        %558 = vmatprep.mubr.f32.mxu0 0.0
        %559 = vmatmul.mubr.f32.gmra.mrb[0].mxu0 %v291
        %v560 = vpop.f32.mrb[0].mxu0
        %v561 = vadd.f32 0.0, %v560
        %v562 = vpop.f32.mrb[0].mxu0
        %563 = vmatprep.mubr.f32.mxu0 0.0
        %564 = vmatmul.mubr.f32.gmra.mrb[0].mxu0 %v294
        %v565 = vpop.f32.mrb[0].mxu0
        %v566 = vadd.f32 0.0, %v565
        %v567 = vpop.f32.mrb[0].mxu0
        %568 = vmatprep.mubr.f32.mxu0 0.0
        %569 = vmatmul.mubr.f32.gmra.mrb[0].mxu0 %v297
        %v570 = vpop.f32.mrb[0].mxu0
        %v571 = vadd.f32 0.0, %v570
        %v572 = vpop.f32.mrb[0].mxu0
        %573 = vmatprep.mubr.f32.mxu0 0.0
        %574 = vmatmul.mubr.f32.gmra.mrb[0].mxu0 %v300
        %v575 = vpop.f32.mrb[0].mxu0
        %v576 = vadd.f32 0.0, %v575
        %v577 = vpop.f32.mrb[0].mxu0
        %578 = vmatprep.mubr.f32.mxu0 0.0
        %579 = vmatmul.mubr.f32.gmra.mrb[0].mxu0 %v303
        %v580 = vpop.f32.mrb[0].mxu0
        %v581 = vadd.f32 0.0, %v580
        %v582 = vpop.f32.mrb[0].mxu0
        %583 = vmatprep.mubr.f32.mxu0 0.0
        %584 = vmatmul.mubr.f32.gmra.mrb[0].mxu0 %v306
        %v585 = vpop.f32.mrb[0].mxu0
        %v586 = vadd.f32 0.0, %v585
        %v587 = vpop.f32.mrb[0].mxu0
        %588 = vmatprep.mubr.f32.mxu0 0.0
        %589 = vmatmul.mubr.f32.gmra.mrb[0].mxu0 %v309
        %v590 = vpop.f32.mrb[0].mxu0
        %v591 = vadd.f32 0.0, %v590
        %v592 = vpop.f32.mrb[0].mxu0
        %593 = vmatprep.mubr.f32.mxu0 0.0
        %594 = vmatmul.mubr.f32.gmra.mrb[0].mxu0 %v312
        %v595 = vpop.f32.mrb[0].mxu0
        %v596 = vadd.f32 0.0, %v595
        %v597 = vpop.f32.mrb[0].mxu0
        %598 = vmatprep.mubr.f32.mxu0 0.0
        %599 = vmatmul.mubr.f32.gmra.mrb[0].mxu0 %v315
        %v600 = vpop.f32.mrb[0].mxu0
        %v601 = vadd.f32 0.0, %v600
        %v602 = vpop.f32.mrb[0].mxu0
        %603 = vmatprep.mubr.f32.mxu0 0.0
        %604 = vmatmul.mubr.f32.gmra.mrb[0].mxu0 %v318
        %v605 = vpop.f32.mrb[0].mxu0
        %v606 = vadd.f32 0.0, %v605
        %v607 = vpop.f32.mrb[0].mxu0
        %608 = vmatprep.mubr.f32.mxu0 0.0
        %609 = vmatmul.mubr.f32.gmra.mrb[0].mxu0 %v321
        %v610 = vpop.f32.mrb[0].mxu0
        %v611 = vadd.f32 0.0, %v610
        %v612 = vpop.f32.mrb[0].mxu0
        %613 = vmatprep.mubr.f32.mxu0 0.0
        %614 = vmatmul.mubr.f32.gmra.mrb[0].mxu0 %v324
        %v615 = vpop.f32.mrb[0].mxu0
        %v616 = vadd.f32 0.0, %v615
        %v617 = vpop.f32.mrb[0].mxu0
        %618 = vmatprep.mubr.f32.mxu0 0.0
        %619 = vmatmul.mubr.f32.gmra.mrb[0].mxu0 %v327
        %v620 = vpop.f32.mrb[0].mxu0
        %v621 = vadd.f32 0.0, %v620
        %v622 = vpop.f32.mrb[0].mxu0
        %623 = vmatprep.mubr.f32.mxu0 0.0
        %624 = vmatmul.mubr.f32.gmra.mrb[0].mxu0 %v330
        %v625 = vpop.f32.mrb[0].mxu0
        %v626 = vadd.f32 0.0, %v625
        %v627 = vpop.f32.mrb[0].mxu0
        %628 = vmatprep.mubr.f32.mxu0 0.0
        %629 = vmatmul.mubr.f32.gmra.mrb[0].mxu0 %v333
        %v630 = vpop.f32.mrb[0].mxu0
        %v631 = vadd.f32 0.0, %v630
        %v632 = vpop.f32.mrb[0].mxu0
        %633 = vmatprep.mubr.f32.mxu0 0.0
        %634 = vmatmul.mubr.f32.gmra.mrb[0].mxu0 %v336
        %v635 = vpop.f32.mrb[0].mxu0
        %v636 = vadd.f32 0.0, %v635
        %v637 = vpop.f32.mrb[0].mxu0
        %638 = vmatprep.mubr.f32.mxu0 0.0
        %639 = vmatmul.mubr.f32.gmra.mrb[0].mxu0 %v339
        %v640 = vpop.f32.mrb[0].mxu0
        %v641 = vadd.f32 0.0, %v640
        %v642 = vpop.f32.mrb[0].mxu0
        %643 = vmatprep.mubr.f32.mxu0 0.0
        %644 = vmatmul.mubr.f32.gmra.mrb[0].mxu0 %v342
        %v645 = vpop.f32.mrb[0].mxu0
        %v646 = vadd.f32 0.0, %v645
        %v647 = vpop.f32.mrb[0].mxu0
        %648 = vmatprep.mubr.f32.mxu0 0.0
        %649 = vmatmul.mubr.f32.gmra.mrb[0].mxu0 %v345
        %v650 = vpop.f32.mrb[0].mxu0
        %v651 = vadd.f32 0.0, %v650
        %v652 = vpop.f32.mrb[0].mxu0
        %653 = vmatprep.mubr.f32.mxu0 0.0
        %654 = vmatmul.mubr.f32.gmra.mrb[0].mxu0 %v348
        %v655 = vpop.f32.mrb[0].mxu0
        %v656 = vadd.f32 0.0, %v655
        %v657 = vpop.f32.mrb[0].mxu0
        %658 = vmatprep.mubr.f32.mxu0 0.0
        %659 = vmatmul.mubr.f32.gmra.mrb[0].mxu0 %v351
        %v660 = vpop.f32.mrb[0].mxu0
        %v661 = vadd.f32 0.0, %v660
        %v662 = vpop.f32.mrb[0].mxu0
        %663 = vmatprep.mubr.f32.mxu0 0.0
        %664 = vmatmul.mubr.f32.gmra.mrb[0].mxu0 %v354
        %v665 = vpop.f32.mrb[0].mxu0
        %v666 = vadd.f32 0.0, %v665
        %v667 = vpop.f32.mrb[0].mxu0
        %668 = vmatprep.mubr.f32.mxu0 0.0
        %669 = vmatmul.mubr.f32.gmra.mrb[0].mxu0 %v357
        %v670 = vpop.f32.mrb[0].mxu0
        %v671 = vadd.f32 0.0, %v670
        %v672 = vpop.f32.mrb[0].mxu0
        %673 = vmatprep.mubr.f32.mxu0 0.0
        %674 = vmatmul.mubr.f32.gmra.mrb[0].mxu0 %v360
        %v675 = vpop.f32.mrb[0].mxu0
        %v676 = vadd.f32 0.0, %v675
        %v677 = vpop.f32.mrb[0].mxu0
        %678 = vmatprep.mubr.f32.mxu0 0.0
        %679 = vmatmul.mubr.f32.gmra.mrb[0].mxu0 %v363
        %v680 = vpop.f32.mrb[0].mxu0
        %v681 = vadd.f32 0.0, %v680
        %v682 = vpop.f32.mrb[0].mxu0
        %683 = vmatprep.mubr.f32.mxu0 0.0
        %684 = vmatmul.mubr.f32.gmra.mrb[0].mxu0 %v366
        %v685 = vpop.f32.mrb[0].mxu0
        %v686 = vadd.f32 0.0, %v685
        %v687 = vpop.f32.mrb[0].mxu0
        %688 = vmatprep.mubr.f32.mxu0 0.0
        %689 = vmatmul.mubr.f32.gmra.mrb[0].mxu0 %v369
        %v690 = vpop.f32.mrb[0].mxu0
        %v691 = vadd.f32 0.0, %v690
        %v692 = vpop.f32.mrb[0].mxu0
        %693 = vmatprep.mubr.f32.mxu0 0.0
        %694 = vmatmul.mubr.f32.gmra.mrb[0].mxu0 %v372
        %v695 = vpop.f32.mrb[0].mxu0
        %v696 = vadd.f32 0.0, %v695
        %v697 = vpop.f32.mrb[0].mxu0
        %698 = vmatprep.mubr.f32.mxu0 0.0
        %699 = vmatmul.mubr.f32.gmra.mrb[0].mxu0 %v375
        %v700 = vpop.f32.mrb[0].mxu0
        %v701 = vadd.f32 0.0, %v700
        %v702 = vpop.f32.mrb[0].mxu0
        %703 = vmatprep.mubr.f32.mxu0 0.0
        %704 = vmatmul.mubr.f32.gmra.mrb[0].mxu0 %v378
        %v705 = vpop.f32.mrb[0].mxu0
        %v706 = vadd.f32 0.0, %v705
        %v707 = vpop.f32.mrb[0].mxu0
        %708 = vmatprep.mubr.f32.mxu0 0.0
        %709 = vmatmul.mubr.f32.gmra.mrb[0].mxu0 %v381
        %v710 = vpop.f32.mrb[0].mxu0
        %v711 = vadd.f32 0.0, %v710
        %v712 = vpop.f32.mrb[0].mxu0
        %713 = vmatprep.mubr.f32.mxu0 0.0
        %714 = vmatmul.mubr.f32.gmra.mrb[0].mxu0 %v384
        %v715 = vpop.f32.mrb[0].mxu0
        %v716 = vadd.f32 0.0, %v715
        %v717 = vpop.f32.mrb[0].mxu0
        %718 = vmatprep.mubr.f32.mxu0 0.0
        %719 = vmatmul.mubr.f32.gmra.mrb[0].mxu0 %v387
        %v720 = vpop.f32.mrb[0].mxu0
        %v721 = vadd.f32 0.0, %v720
        %v722 = vpop.f32.mrb[0].mxu0
        %723 = vmatprep.mubr.f32.mxu0 0.0
        %724 = vmatmul.mubr.f32.gmra.mrb[0].mxu0 %v390
        %v725 = vpop.f32.mrb[0].mxu0
        %v726 = vadd.f32 0.0, %v725
        %v727 = vpop.f32.mrb[0].mxu0
        %728 = vmatprep.mubr.f32.mxu0 0.0
        %729 = vmatmul.mubr.f32.gmra.mrb[0].mxu0 %v393
        %v730 = vpop.f32.mrb[0].mxu0
        %v731 = vadd.f32 0.0, %v730
        %v732 = vpop.f32.mrb[0].mxu0
        %733 = vmatprep.mubr.f32.mxu0 0.0
        %734 = vmatmul.mubr.f32.gmra.mrb[0].mxu0 %v396
        %v735 = vpop.f32.mrb[0].mxu0
        %v736 = vadd.f32 0.0, %v735
        %v737 = vpop.f32.mrb[0].mxu0
        %738 = vmatprep.mubr.f32.mxu0 0.0
        %739 = vmatmul.mubr.f32.gmra.mrb[0].mxu0 %v399
        %v740 = vpop.f32.mrb[0].mxu0
        %v741 = vadd.f32 0.0, %v740
        %v742 = vpop.f32.mrb[0].mxu0
        %743 = vmatprep.mubr.f32.mxu0 0.0
        %744 = vmatmul.mubr.f32.gmra.mrb[0].mxu0 %v402
        %v745 = vpop.f32.mrb[0].mxu0
        %v746 = vadd.f32 0.0, %v745
        %v747 = vpop.f32.mrb[0].mxu0
        %748 = vmatprep.mubr.f32.mxu0 0.0
        %749 = vmatmul.mubr.f32.gmra.mrb[0].mxu0 %v405
        %v750 = vpop.f32.mrb[0].mxu0
        %v751 = vadd.f32 0.0, %v750
        %v752 = vpop.f32.mrb[0].mxu0
        %753 = vmatprep.mubr.f32.mxu0 0.0
        %754 = vmatmul.mubr.f32.gmra.mrb[0].mxu0 %v408
        %v755 = vpop.f32.mrb[0].mxu0
        %v756 = vadd.f32 0.0, %v755
        %v757 = vpop.f32.mrb[0].mxu0
        %758 = vmatprep.mubr.f32.mxu0 0.0
        %759 = vmatmul.mubr.f32.gmra.mrb[0].mxu0 %v411
        %v760 = vpop.f32.mrb[0].mxu0
        %v761 = vadd.f32 0.0, %v760
        %v762 = vpop.f32.mrb[0].mxu0
        %763 = vmatprep.mubr.f32.mxu0 0.0
        %764 = vmatmul.mubr.f32.gmra.mrb[0].mxu0 %v414
        %v765 = vpop.f32.mrb[0].mxu0
        %v766 = vadd.f32 0.0, %v765
        %v767 = vpop.f32.mrb[0].mxu0
        %768 = vmatprep.mubr.f32.mxu0 0.0
        %769 = vmatmul.mubr.f32.gmra.mrb[0].mxu0 %v417
        %v770 = vpop.f32.mrb[0].mxu0
        %v771 = vadd.f32 0.0, %v770
        %v772 = vpop.f32.mrb[0].mxu0
        %773 = vmatprep.mubr.f32.mxu0 0.0
        %774 = vmatmul.mubr.f32.gmra.mrb[0].mxu0 %v420
        %v775 = vpop.f32.mrb[0].mxu0
        %v776 = vadd.f32 0.0, %v775
        %v777 = vpop.f32.mrb[0].mxu0
        %778 = vmatprep.mubr.f32.mxu0 0.0
        %779 = vmatmul.mubr.f32.gmra.mrb[0].mxu0 %v423
        %v780 = vpop.f32.mrb[0].mxu0
        %v781 = vadd.f32 0.0, %v780
        %v782 = vpop.f32.mrb[0].mxu0
        %783 = vmatprep.mubr.f32.mxu0 0.0
        %784 = vmatmul.mubr.f32.gmra.mrb[0].mxu0 %v426
        %v785 = vpop.f32.mrb[0].mxu0
        %v786 = vadd.f32 0.0, %v785
        %v787 = vpop.f32.mrb[0].mxu0
        %788 = vmatprep.mubr.f32.mxu0 0.0
        %789 = vmatmul.mubr.f32.gmra.mrb[0].mxu0 %v429
        %v790 = vpop.f32.mrb[0].mxu0
        %v791 = vadd.f32 0.0, %v790
        %v792 = vpop.f32.mrb[0].mxu0
        %793 = vmatprep.mubr.f32.mxu0 0.0
        %794 = vmatmul.mubr.f32.gmra.mrb[0].mxu0 %v432
        %v795 = vpop.f32.mrb[0].mxu0
        %v796 = vadd.f32 0.0, %v795
        %v797 = vpop.f32.mrb[0].mxu0
        %798 = vmatprep.mubr.f32.mxu0 0.0
        %799 = vmatmul.mubr.f32.gmra.mrb[0].mxu0 %v435
        %v800 = vpop.f32.mrb[0].mxu0
        %v801 = vadd.f32 0.0, %v800
        %v802 = vpop.f32.mrb[0].mxu0
        %803 = vmatprep.mubr.f32.mxu0 0.0
        %804 = vmatmul.mubr.f32.gmra.mrb[0].mxu0 %v438
        %v805 = vpop.f32.mrb[0].mxu0
        %v806 = vadd.f32 0.0, %v805
        %v807 = vpop.f32.mrb[0].mxu0
        %808 = vmatprep.mubr.f32.mxu0 0.0
        %809 = vmatmul.mubr.f32.gmra.mrb[0].mxu0 %v441
        %v810 = vpop.f32.mrb[0].mxu0
        %v811 = vadd.f32 0.0, %v810
        %v812 = vpop.f32.mrb[0].mxu0
        %813 = vmatprep.mubr.f32.mxu0 0.0
        %814 = vmatmul.mubr.f32.gmra.mrb[0].mxu0 %v444
        %v815 = vpop.f32.mrb[0].mxu0
        %v816 = vadd.f32 0.0, %v815
        %v817 = vpop.f32.mrb[0].mxu0
        %818 = vmatprep.mubr.f32.mxu0 0.0
        %819 = vmatmul.mubr.f32.gmra.mrb[0].mxu0 %v447
        %v820 = vpop.f32.mrb[0].mxu0
        %v821 = vadd.f32 0.0, %v820
        %v822 = vpop.f32.mrb[0].mxu0
        %823 = vmatprep.mubr.f32.mxu0 0.0
        %824 = vmatmul.mubr.f32.gmra.mrb[0].mxu0 %v450
        %v825 = vpop.f32.mrb[0].mxu0
        %v826 = vadd.f32 0.0, %v825
        %v827 = vpop.f32.mrb[0].mxu0
        %828 = vmatprep.mubr.f32.mxu0 0.0
        %829 = vmatmul.mubr.f32.gmra.mrb[0].mxu0 %v453
        %v830 = vpop.f32.mrb[0].mxu0
        %v831 = vadd.f32 0.0, %v830
        %v832 = vpop.f32.mrb[0].mxu0
        %833 = vmatprep.mubr.f32.mxu0 0.0
        %834 = vmatmul.mubr.f32.gmra.mrb[0].mxu0 %v456
        %v835 = vpop.f32.mrb[0].mxu0
        %v836 = vadd.f32 0.0, %v835
        %v837 = vpop.f32.mrb[0].mxu0
        %838 = vmatprep.mubr.f32.mxu0 0.0
        %839 = vmatmul.mubr.f32.gmra.mrb[0].mxu0 %v459
        %v840 = vpop.f32.mrb[0].mxu0
        %v841 = vadd.f32 0.0, %v840
        %v842 = vpop.f32.mrb[0].mxu0
        %843 = vmatprep.mubr.f32.mxu0 0.0
        %844 = vmatmul.mubr.f32.gmra.mrb[0].mxu0 %v462
        %v845 = vpop.f32.mrb[0].mxu0
        %v846 = vadd.f32 0.0, %v845
        %v847 = vpop.f32.mrb[0].mxu0
        %848 = vdwg.mxu0
        %v849 = vld [vmem:[%s3] sm:$0xff]
        %v850 = vld [vmem:[%s3 + $0x8] sm:$0xff]
        %v851 = vadd.f32 %v531, %v849
        %v852 = vadd.f32 %v536, %v850
        %v853 = vadd.f32 %v541, %v849
        %v854 = vadd.f32 %v546, %v850
        %v855 = vadd.f32 %v551, %v849
        %v856 = vadd.f32 %v556, %v850
        %v857 = vadd.f32 %v561, %v849
        %v858 = vadd.f32 %v566, %v850
        %v859 = vadd.f32 %v571, %v849
        %v860 = vadd.f32 %v576, %v850
        %v861 = vadd.f32 %v581, %v849
        %v862 = vadd.f32 %v586, %v850
        %v863 = vadd.f32 %v591, %v849
        %v864 = vadd.f32 %v596, %v850
        %v865 = vadd.f32 %v601, %v849
        %v866 = vadd.f32 %v606, %v850
        %v867 = vadd.f32 %v611, %v849
        %v868 = vadd.f32 %v616, %v850
        %v869 = vadd.f32 %v621, %v849
        %v870 = vadd.f32 %v626, %v850
        %v871 = vadd.f32 %v631, %v849
        %v872 = vadd.f32 %v636, %v850
        %v873 = vadd.f32 %v641, %v849
        %v874 = vadd.f32 %v646, %v850
        %v875 = vadd.f32 %v651, %v849
        %v876 = vadd.f32 %v656, %v850
        %v877 = vadd.f32 %v661, %v849
        %v878 = vadd.f32 %v666, %v850
        %v879 = vadd.f32 %v671, %v849
        %v880 = vadd.f32 %v676, %v850
        %v881 = vadd.f32 %v681, %v849
        %v882 = vadd.f32 %v686, %v850
        %v883 = vadd.f32 %v691, %v849
        %v884 = vadd.f32 %v696, %v850
        %v885 = vadd.f32 %v701, %v849
        %v886 = vadd.f32 %v706, %v850
        %v887 = vadd.f32 %v711, %v849
        %v888 = vadd.f32 %v716, %v850
        %v889 = vadd.f32 %v721, %v849
        %v890 = vadd.f32 %v726, %v850
        %v891 = vadd.f32 %v731, %v849
        %v892 = vadd.f32 %v736, %v850
        %v893 = vadd.f32 %v741, %v849
        %v894 = vadd.f32 %v746, %v850
        %v895 = vadd.f32 %v751, %v849
        %v896 = vadd.f32 %v756, %v850
        %v897 = vadd.f32 %v761, %v849
        %v898 = vadd.f32 %v766, %v850
        %v899 = vadd.f32 %v771, %v849
        %v900 = vadd.f32 %v776, %v850
        %v901 = vadd.f32 %v781, %v849
        %v902 = vadd.f32 %v786, %v850
        %v903 = vadd.f32 %v791, %v849
        %v904 = vadd.f32 %v796, %v850
        %v905 = vadd.f32 %v801, %v849
        %v906 = vadd.f32 %v806, %v850
        %v907 = vadd.f32 %v811, %v849
        %v908 = vadd.f32 %v816, %v850
        %v909 = vadd.f32 %v821, %v849
        %v910 = vadd.f32 %v826, %v850
        %v911 = vadd.f32 %v831, %v849
        %v912 = vadd.f32 %v836, %v850
        %v913 = vadd.f32 %v841, %v849
        %v914 = vadd.f32 %v846, %v850
        %v915 = vmax.f32 %v851, %v852
        %v916 = vrot.slane %v915, 4
        %v917 = vmax.f32 %v915, %v916
        %v918 = vrot.slane %v917, 2
        %v919 = vmax.f32 %v917, %v918
        %v920 = vrot.slane %v919, 1
        %v921 = vmax.f32 %v919, %v920
        %v922 = vmax.f32 %v853, %v854
        %v923 = vrot.slane %v922, 4
        %v924 = vmax.f32 %v922, %v923
        %v925 = vrot.slane %v924, 2
        %v926 = vmax.f32 %v924, %v925
        %v927 = vrot.slane %v926, 1
        %v928 = vmax.f32 %v926, %v927
        %v929 = vmax.f32 %v855, %v856
        %v930 = vrot.slane %v929, 4
        %v931 = vmax.f32 %v929, %v930
        %v932 = vrot.slane %v931, 2
        %v933 = vmax.f32 %v931, %v932
        %v934 = vrot.slane %v933, 1
        %v935 = vmax.f32 %v933, %v934
        %v936 = vmax.f32 %v857, %v858
        %v937 = vrot.slane %v936, 4
        %v938 = vmax.f32 %v936, %v937
        %v939 = vrot.slane %v938, 2
        %v940 = vmax.f32 %v938, %v939
        %v941 = vrot.slane %v940, 1
        %v942 = vmax.f32 %v940, %v941
        %v943 = vmax.f32 %v859, %v860
        %v944 = vrot.slane %v943, 4
        %v945 = vmax.f32 %v943, %v944
        %v946 = vrot.slane %v945, 2
        %v947 = vmax.f32 %v945, %v946
        %v948 = vrot.slane %v947, 1
        %v949 = vmax.f32 %v947, %v948
        %v950 = vmax.f32 %v861, %v862
        %v951 = vrot.slane %v950, 4
        %v952 = vmax.f32 %v950, %v951
        %v953 = vrot.slane %v952, 2
        %v954 = vmax.f32 %v952, %v953
        %v955 = vrot.slane %v954, 1
        %v956 = vmax.f32 %v954, %v955
        %v957 = vmax.f32 %v863, %v864
        %v958 = vrot.slane %v957, 4
        %v959 = vmax.f32 %v957, %v958
        %v960 = vrot.slane %v959, 2
        %v961 = vmax.f32 %v959, %v960
        %v962 = vrot.slane %v961, 1
        %v963 = vmax.f32 %v961, %v962
        %v964 = vmax.f32 %v865, %v866
        %v965 = vrot.slane %v964, 4
        %v966 = vmax.f32 %v964, %v965
        %v967 = vrot.slane %v966, 2
        %v968 = vmax.f32 %v966, %v967
        %v969 = vrot.slane %v968, 1
        %v970 = vmax.f32 %v968, %v969
        %v971 = vmax.f32 %v867, %v868
        %v972 = vrot.slane %v971, 4
        %v973 = vmax.f32 %v971, %v972
        %v974 = vrot.slane %v973, 2
        %v975 = vmax.f32 %v973, %v974
        %v976 = vrot.slane %v975, 1
        %v977 = vmax.f32 %v975, %v976
        %v978 = vmax.f32 %v869, %v870
        %v979 = vrot.slane %v978, 4
        %v980 = vmax.f32 %v978, %v979
        %v981 = vrot.slane %v980, 2
        %v982 = vmax.f32 %v980, %v981
        %v983 = vrot.slane %v982, 1
        %v984 = vmax.f32 %v982, %v983
        %v985 = vmax.f32 %v871, %v872
        %v986 = vrot.slane %v985, 4
        %v987 = vmax.f32 %v985, %v986
        %v988 = vrot.slane %v987, 2
        %v989 = vmax.f32 %v987, %v988
        %v990 = vrot.slane %v989, 1
        %v991 = vmax.f32 %v989, %v990
        %v992 = vmax.f32 %v873, %v874
        %v993 = vrot.slane %v992, 4
        %v994 = vmax.f32 %v992, %v993
        %v995 = vrot.slane %v994, 2
        %v996 = vmax.f32 %v994, %v995
        %v997 = vrot.slane %v996, 1
        %v998 = vmax.f32 %v996, %v997
        %v999 = vmax.f32 %v875, %v876
        %v1000 = vrot.slane %v999, 4
        %v1001 = vmax.f32 %v999, %v1000
        %v1002 = vrot.slane %v1001, 2
        %v1003 = vmax.f32 %v1001, %v1002
        %v1004 = vrot.slane %v1003, 1
        %v1005 = vmax.f32 %v1003, %v1004
        %v1006 = vmax.f32 %v877, %v878
        %v1007 = vrot.slane %v1006, 4
        %v1008 = vmax.f32 %v1006, %v1007
        %v1009 = vrot.slane %v1008, 2
        %v1010 = vmax.f32 %v1008, %v1009
        %v1011 = vrot.slane %v1010, 1
        %v1012 = vmax.f32 %v1010, %v1011
        %v1013 = vmax.f32 %v879, %v880
        %v1014 = vrot.slane %v1013, 4
        %v1015 = vmax.f32 %v1013, %v1014
        %v1016 = vrot.slane %v1015, 2
        %v1017 = vmax.f32 %v1015, %v1016
        %v1018 = vrot.slane %v1017, 1
        %v1019 = vmax.f32 %v1017, %v1018
        %v1020 = vmax.f32 %v881, %v882
        %v1021 = vrot.slane %v1020, 4
        %v1022 = vmax.f32 %v1020, %v1021
        %v1023 = vrot.slane %v1022, 2
        %v1024 = vmax.f32 %v1022, %v1023
        %v1025 = vrot.slane %v1024, 1
        %v1026 = vmax.f32 %v1024, %v1025
        %v1027 = vmax.f32 %v883, %v884
        %v1028 = vrot.slane %v1027, 4
        %v1029 = vmax.f32 %v1027, %v1028
        %v1030 = vrot.slane %v1029, 2
        %v1031 = vmax.f32 %v1029, %v1030
        %v1032 = vrot.slane %v1031, 1
        %v1033 = vmax.f32 %v1031, %v1032
        %v1034 = vmax.f32 %v885, %v886
        %v1035 = vrot.slane %v1034, 4
        %v1036 = vmax.f32 %v1034, %v1035
        %v1037 = vrot.slane %v1036, 2
        %v1038 = vmax.f32 %v1036, %v1037
        %v1039 = vrot.slane %v1038, 1
        %v1040 = vmax.f32 %v1038, %v1039
        %v1041 = vmax.f32 %v887, %v888
        %v1042 = vrot.slane %v1041, 4
        %v1043 = vmax.f32 %v1041, %v1042
        %v1044 = vrot.slane %v1043, 2
        %v1045 = vmax.f32 %v1043, %v1044
        %v1046 = vrot.slane %v1045, 1
        %v1047 = vmax.f32 %v1045, %v1046
        %v1048 = vmax.f32 %v889, %v890
        %v1049 = vrot.slane %v1048, 4
        %v1050 = vmax.f32 %v1048, %v1049
        %v1051 = vrot.slane %v1050, 2
        %v1052 = vmax.f32 %v1050, %v1051
        %v1053 = vrot.slane %v1052, 1
        %v1054 = vmax.f32 %v1052, %v1053
        %v1055 = vmax.f32 %v891, %v892
        %v1056 = vrot.slane %v1055, 4
        %v1057 = vmax.f32 %v1055, %v1056
        %v1058 = vrot.slane %v1057, 2
        %v1059 = vmax.f32 %v1057, %v1058
        %v1060 = vrot.slane %v1059, 1
        %v1061 = vmax.f32 %v1059, %v1060
        %v1062 = vmax.f32 %v893, %v894
        %v1063 = vrot.slane %v1062, 4
        %v1064 = vmax.f32 %v1062, %v1063
        %v1065 = vrot.slane %v1064, 2
        %v1066 = vmax.f32 %v1064, %v1065
        %v1067 = vrot.slane %v1066, 1
        %v1068 = vmax.f32 %v1066, %v1067
        %v1069 = vmax.f32 %v895, %v896
        %v1070 = vrot.slane %v1069, 4
        %v1071 = vmax.f32 %v1069, %v1070
        %v1072 = vrot.slane %v1071, 2
        %v1073 = vmax.f32 %v1071, %v1072
        %v1074 = vrot.slane %v1073, 1
        %v1075 = vmax.f32 %v1073, %v1074
        %v1076 = vmax.f32 %v897, %v898
        %v1077 = vrot.slane %v1076, 4
        %v1078 = vmax.f32 %v1076, %v1077
        %v1079 = vrot.slane %v1078, 2
        %v1080 = vmax.f32 %v1078, %v1079
        %v1081 = vrot.slane %v1080, 1
        %v1082 = vmax.f32 %v1080, %v1081
        %v1083 = vmax.f32 %v899, %v900
        %v1084 = vrot.slane %v1083, 4
        %v1085 = vmax.f32 %v1083, %v1084
        %v1086 = vrot.slane %v1085, 2
        %v1087 = vmax.f32 %v1085, %v1086
        %v1088 = vrot.slane %v1087, 1
        %v1089 = vmax.f32 %v1087, %v1088
        %v1090 = vmax.f32 %v901, %v902
        %v1091 = vrot.slane %v1090, 4
        %v1092 = vmax.f32 %v1090, %v1091
        %v1093 = vrot.slane %v1092, 2
        %v1094 = vmax.f32 %v1092, %v1093
        %v1095 = vrot.slane %v1094, 1
        %v1096 = vmax.f32 %v1094, %v1095
        %v1097 = vmax.f32 %v903, %v904
        %v1098 = vrot.slane %v1097, 4
        %v1099 = vmax.f32 %v1097, %v1098
        %v1100 = vrot.slane %v1099, 2
        %v1101 = vmax.f32 %v1099, %v1100
        %v1102 = vrot.slane %v1101, 1
        %v1103 = vmax.f32 %v1101, %v1102
        %v1104 = vmax.f32 %v905, %v906
        %v1105 = vrot.slane %v1104, 4
        %v1106 = vmax.f32 %v1104, %v1105
        %v1107 = vrot.slane %v1106, 2
        %v1108 = vmax.f32 %v1106, %v1107
        %v1109 = vrot.slane %v1108, 1
        %v1110 = vmax.f32 %v1108, %v1109
        %v1111 = vmax.f32 %v907, %v908
        %v1112 = vrot.slane %v1111, 4
        %v1113 = vmax.f32 %v1111, %v1112
        %v1114 = vrot.slane %v1113, 2
        %v1115 = vmax.f32 %v1113, %v1114
        %v1116 = vrot.slane %v1115, 1
        %v1117 = vmax.f32 %v1115, %v1116
        %v1118 = vmax.f32 %v909, %v910
        %v1119 = vrot.slane %v1118, 4
        %v1120 = vmax.f32 %v1118, %v1119
        %v1121 = vrot.slane %v1120, 2
        %v1122 = vmax.f32 %v1120, %v1121
        %v1123 = vrot.slane %v1122, 1
        %v1124 = vmax.f32 %v1122, %v1123
        %v1125 = vmax.f32 %v911, %v912
        %v1126 = vrot.slane %v1125, 4
        %v1127 = vmax.f32 %v1125, %v1126
        %v1128 = vrot.slane %v1127, 2
        %v1129 = vmax.f32 %v1127, %v1128
        %v1130 = vrot.slane %v1129, 1
        %v1131 = vmax.f32 %v1129, %v1130
        %v1132 = vmax.f32 %v913, %v914
        %v1133 = vrot.slane %v1132, 4
        %v1134 = vmax.f32 %v1132, %v1133
        %v1135 = vrot.slane %v1134, 2
        %v1136 = vmax.f32 %v1134, %v1135
        %v1137 = vrot.slane %v1136, 1
        %v1138 = vmax.f32 %v1136, %v1137
        %v1139 = vld [vmem:[%s2] sm:$0x1]
        %v1141 = vlaneseq
        %v1142 = vshrl.u32 %v1141, 7
        %v1143 = vsub.s32 0, %v1142
        %v1144 = vrot.slane %v1139, %v1143
        %v1146 = vadd.f32 %v921, %v1144
        %v1147 = vadd.f32 %v928, %v1144
        %v1148 = vadd.f32 %v935, %v1144
        %v1149 = vadd.f32 %v942, %v1144
        %v1150 = vadd.f32 %v949, %v1144
        %v1151 = vadd.f32 %v956, %v1144
        %v1152 = vadd.f32 %v963, %v1144
        %v1153 = vadd.f32 %v970, %v1144
        %v1154 = vadd.f32 %v977, %v1144
        %v1155 = vadd.f32 %v984, %v1144
        %v1156 = vadd.f32 %v991, %v1144
        %v1157 = vadd.f32 %v998, %v1144
        %v1158 = vadd.f32 %v1005, %v1144
        %v1159 = vadd.f32 %v1012, %v1144
        %v1160 = vadd.f32 %v1019, %v1144
        %v1161 = vadd.f32 %v1026, %v1144
        %v1162 = vadd.f32 %v1033, %v1144
        %v1163 = vadd.f32 %v1040, %v1144
        %v1164 = vadd.f32 %v1047, %v1144
        %v1165 = vadd.f32 %v1054, %v1144
        %v1166 = vadd.f32 %v1061, %v1144
        %v1167 = vadd.f32 %v1068, %v1144
        %v1168 = vadd.f32 %v1075, %v1144
        %v1169 = vadd.f32 %v1082, %v1144
        %v1170 = vadd.f32 %v1089, %v1144
        %v1171 = vadd.f32 %v1096, %v1144
        %v1172 = vadd.f32 %v1103, %v1144
        %v1173 = vadd.f32 %v1110, %v1144
        %v1174 = vadd.f32 %v1117, %v1144
        %v1175 = vadd.f32 %v1124, %v1144
        %v1176 = vadd.f32 %v1131, %v1144
        %v1177 = vadd.f32 %v1138, %v1144
        %v1178 = vtanh.pop %v1146
        %v1179 = vtanh.pop %v1147
        %v1180 = vtanh.pop %v1148
        %v1181 = vtanh.pop %v1149
        %v1182 = vtanh.pop %v1150
        %v1183 = vtanh.pop %v1151
        %v1184 = vtanh.pop %v1152
        %v1185 = vtanh.pop %v1153
        %v1186 = vtanh.pop %v1154
        %v1187 = vtanh.pop %v1155
        %v1188 = vtanh.pop %v1156
        %v1189 = vtanh.pop %v1157
        %v1190 = vtanh.pop %v1158
        %v1191 = vtanh.pop %v1159
        %v1192 = vtanh.pop %v1160
        %v1193 = vtanh.pop %v1161
        %v1194 = vtanh.pop %v1162
        %v1195 = vtanh.pop %v1163
        %v1196 = vtanh.pop %v1164
        %v1197 = vtanh.pop %v1165
        %v1198 = vtanh.pop %v1166
        %v1199 = vtanh.pop %v1167
        %v1200 = vtanh.pop %v1168
        %v1201 = vtanh.pop %v1169
        %v1202 = vtanh.pop %v1170
        %v1203 = vtanh.pop %v1171
        %v1204 = vtanh.pop %v1172
        %v1205 = vtanh.pop %v1173
        %v1206 = vtanh.pop %v1174
        %v1207 = vtanh.pop %v1175
        %v1208 = vtanh.pop %v1176
        %v1209 = vtanh.pop %v1177
        %v1242 = vrot.slane %v1179, 7
        %vm1243 = vcmask 1041409
        %v1244 = vsel %vm1243, %v1242, %v1178
        %v1245 = vrot.slane %v1180, 6
        %vm1246 = vcmask 1042434
        %v1247 = vsel %vm1246, %v1245, %v1244
        %v1248 = vrot.slane %v1181, 5
        %vm1249 = vcmask 1043459
        %v1250 = vsel %vm1249, %v1248, %v1247
        %v1251 = vrot.slane %v1182, 4
        %vm1252 = vcmask 1044484
        %v1253 = vsel %vm1252, %v1251, %v1250
        %v1254 = vrot.slane %v1183, 3
        %vm1255 = vcmask 1045509
        %v1256 = vsel %vm1255, %v1254, %v1253
        %v1257 = vrot.slane %v1184, 2
        %vm1258 = vcmask 1046534
        %v1259 = vsel %vm1258, %v1257, %v1256
        %v1260 = vrot.slane %v1185, 1
        %vm1261 = vcmask 1047559
        %v1262 = vsel %vm1261, %v1260, %v1259
        %v1263 = vrot.slane %v1187, 7
        %v1264 = vsel %vm1243, %v1263, %v1186
        %v1265 = vrot.slane %v1188, 6
        %v1266 = vsel %vm1246, %v1265, %v1264
        %v1267 = vrot.slane %v1189, 5
        %v1268 = vsel %vm1249, %v1267, %v1266
        %v1269 = vrot.slane %v1190, 4
        %v1270 = vsel %vm1252, %v1269, %v1268
        %v1271 = vrot.slane %v1191, 3
        %v1272 = vsel %vm1255, %v1271, %v1270
        %v1273 = vrot.slane %v1192, 2
        %v1274 = vsel %vm1258, %v1273, %v1272
        %v1275 = vrot.slane %v1193, 1
        %v1276 = vsel %vm1261, %v1275, %v1274
        %v1277 = vrot.slane %v1195, 7
        %v1278 = vsel %vm1243, %v1277, %v1194
        %v1279 = vrot.slane %v1196, 6
        %v1280 = vsel %vm1246, %v1279, %v1278
        %v1281 = vrot.slane %v1197, 5
        %v1282 = vsel %vm1249, %v1281, %v1280
        %v1283 = vrot.slane %v1198, 4
        %v1284 = vsel %vm1252, %v1283, %v1282
        %v1285 = vrot.slane %v1199, 3
        %v1286 = vsel %vm1255, %v1285, %v1284
        %v1287 = vrot.slane %v1200, 2
        %v1288 = vsel %vm1258, %v1287, %v1286
        %v1289 = vrot.slane %v1201, 1
        %v1290 = vsel %vm1261, %v1289, %v1288
        %v1291 = vrot.slane %v1203, 7
        %v1292 = vsel %vm1243, %v1291, %v1202
        %v1293 = vrot.slane %v1204, 6
        %v1294 = vsel %vm1246, %v1293, %v1292
        %v1295 = vrot.slane %v1205, 5
        %v1296 = vsel %vm1249, %v1295, %v1294
        %v1297 = vrot.slane %v1206, 4
        %v1298 = vsel %vm1252, %v1297, %v1296
        %v1299 = vrot.slane %v1207, 3
        %v1300 = vsel %vm1255, %v1299, %v1298
        %v1301 = vrot.slane %v1208, 2
        %v1302 = vsel %vm1258, %v1301, %v1300
        %v1303 = vrot.slane %v1209, 1
        %v1304 = vsel %vm1261, %v1303, %v1302
        %1309 = vst [vmem:[%s191] sm:$0xff] %v1262
        %1310 = vst [vmem:[%s191 + $0x8] sm:$0xff] %v1276
        %1311 = vst [vmem:[%s191 + $0x10] sm:$0xff] %v1290
        %1312 = vst [vmem:[%s191 + $0x18] sm:$0xff] %v1304
        %s1313 = sand.u32 %s115, 1
        %s1314 = scalar_lea.sflag [#allocation3], %s1313
        %s1315 = sand.u32 %s115, 1
        %s1316 = smul.addr %s1315, 32
        %s1317 = scalar_lea.vmem [#allocation2], %s1316
        // Predicated region
        $region37: #{tpu_custom_call.1} parent=35 // pred_check
          %p1318 = pneg %p125
        $region38: #{tpu_custom_call.1} parent=35 // pred_check_branch
          %1320 = sbr.rel (%p1318) target = $region40
        $region39: #{tpu_custom_call.1} parent=35 // pred_region
          %s1321 = smul.u32 4, %s18
          %s1323 = ssub.s32 512, 512
          %1324 = vsyncadd %s1314, %s1323
          %s1325 = smul.addr %s1321, 128
          %s1326 = scalar_lea.hbm %s4, %s1325
          %s1327 = sshll.u32 %s1317, 4
          %s1328 = int_to_ptr.vmem [resolvable:$true] %s1327
          %1333 = dma.vmem_to_hbm [thread:$0]  %s1328, 512, %s1326, %s1314, 128, 128, 8
        $region40: #{tpu_custom_call.1} parent=35 // pred_fallthru
          _
      $region36: #{tpu_custom_call.1} parent=5 // pred_fallthru
        _
      %p1334 = scmp.le.s32.totalorder 2, %s13
      // Predicated region
      $region41: #{tpu_custom_call.1} parent=5 // pred_check
        %p1335 = pneg %p1334
      $region42: #{tpu_custom_call.1} parent=5 // pred_check_branch
        %1337 = sbr.rel (%p1335) target = $region44
      $region43: #{tpu_custom_call.1} parent=5 // pred_region
        %s1338 = ssub.s32 %s13, 2
        // Predicated region
        $region45: #{tpu_custom_call.1} parent=43 // pred_check
          %p1339 = pneg %p131
        $region46: #{tpu_custom_call.1} parent=43 // pred_check_branch
          %1341 = sbr.rel (%p1339) target = $region48
        $region47: #{tpu_custom_call.1} parent=43 // pred_region
          %s1342 = sand.u32 %s116, 1
          %s1343 = scalar_lea.sflag [#allocation3], %s1342
          %s1344 = sand.u32 %s116, 1
          %s1345 = smul.addr %s1344, 32
          %s1346 = scalar_lea.vmem [#allocation2], %s1345
          %1347 = dma.done %s1343, 512
        $region48: #{tpu_custom_call.1} parent=43 // pred_fallthru
          _
      $region44: #{tpu_custom_call.1} parent=5 // pred_fallthru
        _
    $region6: #{tpu_custom_call.1} parent=1 // loop_footer
      %s17 = sadd.s32 1, %s13
    $region7: #{tpu_custom_call.1} parent=1 // loop_footer_branch
      %12 = sbr.rel target = $region3
    $region8: #{tpu_custom_call.1} parent=1 // loop_exit
      _
    %1348 = vsyncpa [#allocation3], 1
    %s1349 = scalar_lea.sflag [#allocation3], 1
    %1350 = vsyncpa %s1349, 1

</llo_original>
